<compile_context>
chip_gen: v7x
topology: tpu7x:2x2x1
jax: 0.10.0
libtpu: 0.0.40
codegen_flags: <defaults>
</compile_context>

<pallas_src>
import functools

import jax
import jax.numpy as jnp
from jax.experimental import pallas as pl
from jax.experimental.pallas import tpu as pltpu


def _mgui_kernel(x1_ref, x2_ref, rxt_ref, a_ref, b_ref, o_ref,
                 *, Nb, Cin, Cout, H0, W0, H, W):
    """Processes one block of `Nb` batch elements.

    x1_ref : (1, Nb*Cin*H0, W0)    bf16  input feature-map block
    x2_ref : (Nb, Cout*H, W)       f32   residual block
    rxt_ref: (W0, 3*W)             bf16  col-interp matrices, dx taps fused
    a_ref  : (3, Cout*H, Cin*H0)   bf16  conv-weight-folded row-interp mats
    b_ref  : (Cout*H, 1)           f32   conv bias (repeated over H)
    o_ref  : (1, Nb, 2*Cout)       f32   [avg | max] pooled output
    """
    # ---- Stage 1: column interpolation (resize + zero-pad + 3 dx taps) ----
    # One MXU matmul with M = Nb*Cin*H0 (batch/channels folded into M).
    x1 = x1_ref[0]                                              # (Nb*Cin*H0, W0)
    cols = jnp.dot(x1, rxt_ref[...],
                   preferred_element_type=jnp.float32)          # (Nb*Cin*H0, 3W)
    # Single bf16 re-cast of the f32-accumulated intermediate.
    cols = cols.reshape(Nb, Cin * H0, 3 * W).astype(jnp.bfloat16)

    # ---- Stage 2: row interpolation + dy taps + conv weights (all in A) ---
    # Three batched MXU matmuls (one per dx tap), f32 accumulation on MXU.
    a = a_ref[...]                                              # hoisted once
    conv = jnp.zeros((Nb, Cout * H, W), jnp.float32)
    for dx in range(3):                                         # static unroll
        a_b = jnp.broadcast_to(a[dx], (Nb, Cout * H, Cin * H0))
        conv = conv + jnp.einsum(
            'nmk,nkw->nmw', a_b, cols[:, :, dx * W:(dx + 1) * W],
            preferred_element_type=jnp.float32)                 # (Nb,Cout*H,W)

    # ---- Epilogue: bias + ReLU + residual (VPU, f32) -----------------------
    out3 = jnp.maximum(conv + b_ref[...], 0.0) + x2_ref[...]    # (Nb,Cout*H,W)

    # ---- Global avg / max pooling -> one lane-dense (Nb, 2*Cout) store -----
    out4 = out3.reshape(Nb, Cout, H, W)                         # sublane split
    inv_hw = 1.0 / float(H * W)
    avg = jnp.sum(jnp.sum(out4, axis=-1), axis=-1) * inv_hw     # (Nb, Cout)
    mx = jnp.max(jnp.max(out4, axis=-1), axis=-1)               # (Nb, Cout)
    o_ref[0] = jnp.concatenate([avg, mx], axis=-1)              # (Nb, 2*Cout)


# ------------------------------ wrapper helpers ------------------------------

def _interp_matrix(n_out, n_in):
    """(n_out, n_in) bilinear interpolation matrix, align_corners=True."""
    if n_out > 1:
        src = jnp.arange(n_out, dtype=jnp.float32) * ((n_in - 1) / (n_out - 1))
    else:
        src = jnp.zeros((n_out,), jnp.float32)
    i0 = jnp.clip(jnp.floor(src).astype(jnp.int32), 0, n_in - 1)
    i1 = jnp.minimum(i0 + 1, n_in - 1)
    frac = src - i0.astype(jnp.float32)
    return (jax.nn.one_hot(i0, n_in, dtype=jnp.float32) * (1.0 - frac)[:, None]
            + jax.nn.one_hot(i1, n_in, dtype=jnp.float32) * frac[:, None])


def _tap_shifted(m):
    """(3, n_out, n_in): entry k is `m` shifted for conv tap offset k-1,
    with zero rows where the zero-padded input would be read."""
    z = jnp.zeros((1, m.shape[1]), m.dtype)
    up = jnp.concatenate([z, m[:-1]], axis=0)      # tap 0: row h <- m[h-1]
    down = jnp.concatenate([m[1:], z], axis=0)     # tap 2: row h <- m[h+1]
    return jnp.stack([up, m, down], axis=0)


def _pick_batch_block(n):
    """Largest divisor of n that is <= 8 while keeping grid length >= 2
    (both v7x TensorCores busy) and amortizing per-grid-step overhead."""
    best = 1
    for cand in range(1, min(n, 8) + 1):
        if n % cand == 0 and (n // cand >= 2 or n == 1):
            best = cand
    return best


def _round_up(x, m):
    return (x + m - 1) // m * m


def _vmem_limit_bytes(Nb, Cin, Cout, H0, W0, H, W):
    """Explicit VMEM budget: 2 pipeline buffers per blocked array + constants
    + in-kernel intermediates, with headroom (v7x has only 64 MiB physical)."""
    lane = 128
    x1_blk = _round_up(Nb * Cin * H0, 16) * _round_up(W0, lane) * 2      # bf16
    x2_blk = Nb * _round_up(Cout * H, 8) * _round_up(W, lane) * 4        # f32
    out_blk = _round_up(Nb, 8) * _round_up(2 * Cout, lane) * 4
    consts = (_round_up(W0, 16) * _round_up(3 * W, lane) * 2
              + 3 * _round_up(Cout * H, 16) * _round_up(Cin * H0, lane) * 2
              + _round_up(Cout * H, 8) * lane * 4)
    scratch = 4 * (_round_up(Nb * Cin * H0, 8) * _round_up(3 * W, lane)
                   + 2 * Nb * _round_up(Cout * H, 8) * _round_up(W, lane)) * 4
    need = 2 * (x1_blk + x2_blk + out_blk) + 2 * consts + scratch + (4 << 20)
    return int(min(max(need, 16 << 20), 100 << 20))


def mgui_forward(x1, x2, weight, bias, *, batch_block=None):
    """x1: (N, Cin, H0, W0); x2: (N, Cout, H0//2, W0//2) (PyTorch NCHW);
    weight: (Cout, Cin, 3, 3) OIHW; bias: (Cout,).  Returns (N, 2*Cout)."""
    N, Cin, H0, W0 = x1.shape
    Cout = weight.shape[0]
    H, W = H0 // 2, W0 // 2
    assert x2.shape == (N, Cout, H, W), (x2.shape, (N, Cout, H, W))

    Nb = _pick_batch_block(N) if batch_block is None else batch_block
    assert N % Nb == 0, (N, Nb)
    G = N // Nb

    # Constants folding bilinear resize + zero-pad + 3x3 taps (+ conv weights).
    ry_taps = _tap_shifted(_interp_matrix(H, H0))                  # (3, H, H0)
    rx_taps = _tap_shifted(_interp_matrix(W, W0))                  # (3, W, W0)
    # RXT[w0, dx*W + w] = rx_taps[dx, w, w0]  (all dx taps fused on lanes)
    rxt = (jnp.transpose(rx_taps, (2, 0, 1))
           .reshape(W0, 3 * W).astype(jnp.bfloat16))               # (W0, 3W)
    # A[dx, co*H + h, ci*H0 + h0] = sum_dy weight[co,ci,dy,dx] * ry_taps[dy,h,h0]
    a = jnp.einsum('oiyx,yhk->xohik', weight.astype(jnp.float32), ry_taps)
    a = a.reshape(3, Cout * H, Cin * H0).astype(jnp.bfloat16)      # (3, CoH, CiH0)
    b_col = jnp.repeat(bias.astype(jnp.float32), H).reshape(Cout * H, 1)

    # Data layout: bf16 x1 grouped per grid step; x2 flattened to (Cout*H, W).
    x1g = x1.astype(jnp.bfloat16).reshape(G, Nb * Cin * H0, W0)
    x2f = x2.astype(jnp.float32).reshape(N, Cout * H, W)

    flops = N * (2 * Cin * H0 * W0 * 3 * W            # stage 1 (col interp)
                 + 3 * 2 * Cout * H * Cin * H0 * W    # stage 2 (rows + conv)
                 + 6 * Cout * H * W)                  # epilogue + pooling
    bytes_accessed = (x1g.size * 2 + x2f.size * 4 + N * 2 * Cout * 4
                      + rxt.size * 2 + a.size * 2 + b_col.size * 4)

    kernel = functools.partial(_mgui_kernel, Nb=Nb, Cin=Cin, Cout=Cout,
                               H0=H0, W0=W0, H=H, W=W)
    out = pl.pallas_call(
        kernel,
        out_shape=jax.ShapeDtypeStruct((G, Nb, 2 * Cout), jnp.float32),
        grid=(G,),
        in_specs=[
            pl.BlockSpec((1, Nb * Cin * H0, W0), lambda n: (n, 0, 0)),
            pl.BlockSpec((Nb, Cout * H, W), lambda n: (n, 0, 0)),
            pl.BlockSpec((W0, 3 * W), lambda n: (0, 0)),
            pl.BlockSpec((3, Cout * H, Cin * H0), lambda n: (0, 0, 0)),
            pl.BlockSpec((Cout * H, 1), lambda n: (0, 0)),
        ],
        out_specs=pl.BlockSpec((1, Nb, 2 * Cout), lambda n: (n, 0, 0)),
        compiler_params=pltpu.CompilerParams(
            dimension_semantics=("parallel",),
            vmem_limit_bytes=_vmem_limit_bytes(Nb, Cin, Cout, H0, W0, H, W)),
        cost_estimate=pl.CostEstimate(flops=flops, transcendentals=0,
                                      bytes_accessed=bytes_accessed),
    )(x1g, x2f, rxt, a, b_col)
    return out.reshape(N, 2 * Cout)


# ----------------------------- pure-JAX reference ---------------------------

def _bilinear_half_align_corners(x):
    """x: (N, C, H, W) -> (N, C, H//2, W//2), bilinear, align_corners=True."""
    N, C, Hin, Win = x.shape
    oh, ow = Hin // 2, Win // 2

    def coords(n_in, n_out):
        if n_out > 1:
            return jnp.arange(n_out, dtype=jnp.float32) * (n_in - 1) / (n_out - 1)
        return jnp.zeros((n_out,), jnp.float32)

    ys, xs = coords(Hin, oh), coords(Win, ow)
    y0 = jnp.floor(ys).astype(jnp.int32)
    y1 = jnp.minimum(y0 + 1, Hin - 1)
    x0 = jnp.floor(xs).astype(jnp.int32)
    x1 = jnp.minimum(x0 + 1, Win - 1)
    wy = (ys - y0.astype(jnp.float32))[None, None, :, None]
    wx = (xs - x0.astype(jnp.float32))[None, None, None, :]

    row0 = x[:, :, y0]
    row1 = x[:, :, y1]
    top = row0[:, :, :, x0] * (1.0 - wx) + row0[:, :, :, x1] * wx
    bot = row1[:, :, :, x0] * (1.0 - wx) + row1[:, :, :, x1] * wx
    return top * (1.0 - wy) + bot * wy


def _reference(x1, x2, weight, bias):
    x1d = _bilinear_half_align_corners(x1.astype(jnp.float32))     # (N,Cin,H,W)
    conv = jax.lax.conv_general_dilated(
        x1d, weight.astype(jnp.float32), window_strides=(1, 1), padding="SAME",
        dimension_numbers=("NCHW", "OIHW", "NCHW"))
    conv = jnp.maximum(conv + bias[None, :, None, None], 0.0)
    out = conv + x2.astype(jnp.float32)
    avg = jnp.mean(out, axis=(2, 3))
    mx = jnp.max(out, axis=(2, 3))
    return jnp.concatenate([avg, mx], axis=1)


if __name__ == "__main__":
    N, Cin, Cout, H0, W0 = 2, 4, 8, 16, 16

    key = jax.random.PRNGKey(0)
    k1, k2, k3, k4 = jax.random.split(key, 4)
    x1 = jax.random.normal(k1, (N, Cin, H0, W0), dtype=jnp.float32)
    x2 = jax.random.normal(k2, (N, Cout, H0 // 2, W0 // 2), dtype=jnp.float32)
    weight = 0.1 * jax.random.normal(k3, (Cout, Cin, 3, 3), dtype=jnp.float32)
    bias = 0.1 * jax.random.normal(k4, (Cout,), dtype=jnp.float32)

    out = jax.block_until_ready(mgui_forward(x1, x2, weight, bias))
    ref = jax.block_until_ready(_reference(x1, x2, weight, bias))

    assert out.shape == (N, 2 * Cout), out.shape
    # The kernel runs its MXU matmuls with bf16 operands (f32 accumulation),
    # so allow a small quantisation tolerance vs the f32 reference.
    assert jnp.allclose(out, ref, rtol=2e-2, atol=2e-2), (out, ref)
    print("KERNEL_OK")
</pallas_src>

<mosaic_0001>
module attributes {stable_mosaic.version = 11 : i64} {
  func.func @_mgui_kernel(%arg0: i32, %arg1: memref<1x64x16xbf16, #tpu.memory_space<vmem>>, %arg2: memref<1x64x8xf32, #tpu.memory_space<vmem>>, %arg3: memref<16x24xbf16, #tpu.memory_space<vmem>>, %arg4: memref<3x64x64xbf16, #tpu.memory_space<vmem>>, %arg5: memref<64x1xf32, #tpu.memory_space<vmem>>, %arg6: memref<1x1x16xf32, #tpu.memory_space<vmem>>) attributes {dimension_semantics = [#tpu.dimension_semantics<parallel>], iteration_bounds = array<i64: 2>, scalar_prefetch = 0 : i64, scratch_operands = 0 : i64, tpu.core_type = #tpu.core_type<tc>, window_params = [{transform_indices = @transform_0, window_bounds = array<i64: 1, 64, 16>}, {transform_indices = @transform_1, window_bounds = array<i64: 1, 64, 8>}, {pipeline_mode = #tpu.pipeline_mode<synchronous>, transform_indices = @transform_2, window_bounds = array<i64: 16, 24>}, {pipeline_mode = #tpu.pipeline_mode<synchronous>, transform_indices = @transform_3, window_bounds = array<i64: 3, 64, 64>}, {pipeline_mode = #tpu.pipeline_mode<synchronous>, transform_indices = @transform_4, window_bounds = array<i64: 64, 1>}, {transform_indices = @transform_5, window_bounds = array<i64: 1, 1, 16>}]} {
    %c0 = arith.constant 0 : index
    %c0_0 = arith.constant 0 : index
    %c0_1 = arith.constant 0 : index
    %0 = vector.load %arg1[%c0, %c0_0, %c0_1] : memref<1x64x16xbf16, #tpu.memory_space<vmem>>, vector<1x64x16xbf16>
    %1 = vector.shape_cast %0 : vector<1x64x16xbf16> to vector<64x16xbf16>
    %c0_2 = arith.constant 0 : index
    %c0_3 = arith.constant 0 : index
    %2 = vector.load %arg3[%c0_2, %c0_3] : memref<16x24xbf16, #tpu.memory_space<vmem>>, vector<16x24xbf16>
    %cst = arith.constant dense<0.000000e+00> : vector<64x24xf32>
    %3 = tpu.matmul %1, %2, %cst {dimension_numbers = #tpu.dot_dimension_numbers<[1], [0], [0], [1], [0, 0, 1, 1], [], []>} : vector<64x16xbf16>, vector<16x24xbf16>, vector<64x24xf32> -> vector<64x24xf32>
    %4 = vector.shape_cast %3 : vector<64x24xf32> to vector<1x64x24xf32>
    %5 = arith.truncf %4 : vector<1x64x24xf32> to vector<1x64x24xbf16>
    %c0_4 = arith.constant 0 : index
    %c0_5 = arith.constant 0 : index
    %c0_6 = arith.constant 0 : index
    %6 = vector.load %arg4[%c0_4, %c0_5, %c0_6] : memref<3x64x64xbf16, #tpu.memory_space<vmem>>, vector<3x64x64xbf16>
    %cst_7 = arith.constant 0.000000e+00 : f32
    %7 = vector.broadcast %cst_7 : f32 to vector<1x64x8xf32>
    %8 = vector.extract_strided_slice %6 {offsets = [0, 0, 0], sizes = [1, 64, 64], strides = [1, 1, 1]} : vector<3x64x64xbf16> to vector<1x64x64xbf16>
    %9 = vector.shape_cast %8 : vector<1x64x64xbf16> to vector<64x64xbf16>
    %10 = vector.shape_cast %9 : vector<64x64xbf16> to vector<1x64x64xbf16>
    %11 = vector.extract_strided_slice %5 {offsets = [0, 0, 0], sizes = [1, 64, 8], strides = [1, 1, 1]} : vector<1x64x24xbf16> to vector<1x64x8xbf16>
    "tpu.trace_start"() <{level = 10 : i32, message = "nmk,nkw->nmw"}> : () -> ()
    %cst_8 = arith.constant dense<0.000000e+00> : vector<1x64x8xf32>
    %12 = tpu.matmul %10, %11, %cst_8 {dimension_numbers = #tpu.dot_dimension_numbers<[2], [1], [1], [2], [0, 0, 0, 1, 1, 2], [0], [0]>} : vector<1x64x64xbf16>, vector<1x64x8xbf16>, vector<1x64x8xf32> -> vector<1x64x8xf32>
    "tpu.trace_stop"() : () -> ()
    %13 = arith.addf %7, %12 : vector<1x64x8xf32>
    %14 = vector.extract_strided_slice %6 {offsets = [1, 0, 0], sizes = [1, 64, 64], strides = [1, 1, 1]} : vector<3x64x64xbf16> to vector<1x64x64xbf16>
    %15 = vector.shape_cast %14 : vector<1x64x64xbf16> to vector<64x64xbf16>
    %16 = vector.shape_cast %15 : vector<64x64xbf16> to vector<1x64x64xbf16>
    %17 = vector.extract_strided_slice %5 {offsets = [0, 0, 8], sizes = [1, 64, 8], strides = [1, 1, 1]} : vector<1x64x24xbf16> to vector<1x64x8xbf16>
    "tpu.trace_start"() <{level = 10 : i32, message = "nmk,nkw->nmw"}> : () -> ()
    %cst_9 = arith.constant dense<0.000000e+00> : vector<1x64x8xf32>
    %18 = tpu.matmul %16, %17, %cst_9 {dimension_numbers = #tpu.dot_dimension_numbers<[2], [1], [1], [2], [0, 0, 0, 1, 1, 2], [0], [0]>} : vector<1x64x64xbf16>, vector<1x64x8xbf16>, vector<1x64x8xf32> -> vector<1x64x8xf32>
    "tpu.trace_stop"() : () -> ()
    %19 = arith.addf %13, %18 : vector<1x64x8xf32>
    %20 = vector.extract_strided_slice %6 {offsets = [2, 0, 0], sizes = [1, 64, 64], strides = [1, 1, 1]} : vector<3x64x64xbf16> to vector<1x64x64xbf16>
    %21 = vector.shape_cast %20 : vector<1x64x64xbf16> to vector<64x64xbf16>
    %22 = vector.shape_cast %21 : vector<64x64xbf16> to vector<1x64x64xbf16>
    %23 = vector.extract_strided_slice %5 {offsets = [0, 0, 16], sizes = [1, 64, 8], strides = [1, 1, 1]} : vector<1x64x24xbf16> to vector<1x64x8xbf16>
    "tpu.trace_start"() <{level = 10 : i32, message = "nmk,nkw->nmw"}> : () -> ()
    %cst_10 = arith.constant dense<0.000000e+00> : vector<1x64x8xf32>
    %24 = tpu.matmul %22, %23, %cst_10 {dimension_numbers = #tpu.dot_dimension_numbers<[2], [1], [1], [2], [0, 0, 0, 1, 1, 2], [0], [0]>} : vector<1x64x64xbf16>, vector<1x64x8xbf16>, vector<1x64x8xf32> -> vector<1x64x8xf32>
    "tpu.trace_stop"() : () -> ()
    %25 = arith.addf %19, %24 : vector<1x64x8xf32>
    %c0_11 = arith.constant 0 : index
    %c0_12 = arith.constant 0 : index
    %26 = vector.load %arg5[%c0_11, %c0_12] : memref<64x1xf32, #tpu.memory_space<vmem>>, vector<64x1xf32>
    %27 = vector.shape_cast %26 : vector<64x1xf32> to vector<1x64x1xf32>
    %28 = vector.broadcast %27 : vector<1x64x1xf32> to vector<1x64x8xf32>
    %29 = arith.addf %25, %28 : vector<1x64x8xf32>
    %cst_13 = arith.constant 0.000000e+00 : f32
    %30 = vector.broadcast %cst_13 : f32 to vector<1x64x8xf32>
    %31 = arith.maximumf %29, %30 : vector<1x64x8xf32>
    %c0_14 = arith.constant 0 : index
    %c0_15 = arith.constant 0 : index
    %c0_16 = arith.constant 0 : index
    %32 = vector.load %arg2[%c0_14, %c0_15, %c0_16] : memref<1x64x8xf32, #tpu.memory_space<vmem>>, vector<1x64x8xf32>
    %33 = arith.addf %31, %32 : vector<1x64x8xf32>
    %34 = vector.shape_cast %33 : vector<1x64x8xf32> to vector<1x8x8x8xf32>
    %cst_17 = arith.constant dense<0.000000e+00> : vector<1x8x8xf32>
    %35 = vector.multi_reduction <add>, %34, %cst_17 [3] : vector<1x8x8x8xf32> to vector<1x8x8xf32>
    %cst_18 = arith.constant dense<0.000000e+00> : vector<1x8xf32>
    %36 = vector.multi_reduction <add>, %35, %cst_18 [2] : vector<1x8x8xf32> to vector<1x8xf32>
    %cst_19 = arith.constant 1.562500e-02 : f32
    %37 = vector.broadcast %cst_19 : f32 to vector<1x8xf32>
    %38 = arith.mulf %36, %37 : vector<1x8xf32>
    %cst_20 = arith.constant dense<0xFF800000> : vector<1x8x8xf32>
    %39 = vector.multi_reduction <maximumf>, %34, %cst_20 [3] : vector<1x8x8x8xf32> to vector<1x8x8xf32>
    %cst_21 = arith.constant dense<0xFF800000> : vector<1x8xf32>
    %40 = vector.multi_reduction <maximumf>, %39, %cst_21 [2] : vector<1x8x8xf32> to vector<1x8xf32>
    %41 = tpu.concatenate %38, %40 in 1 : vector<1x8xf32>, vector<1x8xf32> -> vector<1x16xf32>
    %c0_22 = arith.constant 0 : index
    %c0_23 = arith.constant 0 : index
    %c0_24 = arith.constant 0 : index
    %42 = vector.load %arg6[%c0_22, %c0_23, %c0_24] : memref<1x1x16xf32, #tpu.memory_space<vmem>>, vector<1x1x16xf32>
    %43 = vector.shape_cast %42 : vector<1x1x16xf32> to vector<1x16xf32>
    %44 = vector.shape_cast %41 : vector<1x16xf32> to vector<1x1x16xf32>
    tpu.vector_store %arg6[%c0_22, %c0_23, %c0_24], %44 {strides = array<i32>} : memref<1x1x16xf32, #tpu.memory_space<vmem>>, vector<1x1x16xf32>,
    return
  }
  func.func @transform_0(%arg0: i32) -> (i32, i32, i32) {
    %c0_i32 = arith.constant 0 : i32
    %c0_i32_0 = arith.constant 0 : i32
    %c0_i32_1 = arith.constant 0 : i32
    return %arg0, %c0_i32, %c0_i32_0 : i32, i32, i32
  }
  func.func @transform_1(%arg0: i32) -> (i32, i32, i32) {
    %c0_i32 = arith.constant 0 : i32
    %c0_i32_0 = arith.constant 0 : i32
    %c0_i32_1 = arith.constant 0 : i32
    return %arg0, %c0_i32, %c0_i32_0 : i32, i32, i32
  }
  func.func @transform_2(%arg0: i32) -> (i32, i32) {
    %c0_i32 = arith.constant 0 : i32
    %c0_i32_0 = arith.constant 0 : i32
    %c0_i32_1 = arith.constant 0 : i32
    return %c0_i32, %c0_i32_0 : i32, i32
  }
  func.func @transform_3(%arg0: i32) -> (i32, i32, i32) {
    %c0_i32 = arith.constant 0 : i32
    %c0_i32_0 = arith.constant 0 : i32
    %c0_i32_1 = arith.constant 0 : i32
    %c0_i32_2 = arith.constant 0 : i32
    return %c0_i32, %c0_i32_0, %c0_i32_1 : i32, i32, i32
  }
  func.func @transform_4(%arg0: i32) -> (i32, i32) {
    %c0_i32 = arith.constant 0 : i32
    %c0_i32_0 = arith.constant 0 : i32
    %c0_i32_1 = arith.constant 0 : i32
    return %c0_i32, %c0_i32_0 : i32, i32
  }
  func.func @transform_5(%arg0: i32) -> (i32, i32, i32) {
    %c0_i32 = arith.constant 0 : i32
    %c0_i32_0 = arith.constant 0 : i32
    %c0_i32_1 = arith.constant 0 : i32
    return %arg0, %c0_i32, %c0_i32_0 : i32, i32, i32
  }
}

</mosaic_0001>

<llo_original>
// kernel: tpu_custom_call.1
$region0: #{tpu_custom_call.1}
  #allocation0 [shape = 'u32[]', space=smem, size = 0x4, offset = 0x4, fixed_abs, tag = 'smem constant byte address 0x4 - core index']
  #allocation1 [shape = 'u32[144,128]{1,0:T(1,128)}', space=vmem, size = 0x12000, scoped, tag = 'internal scratch']
  %s0 = inlined_call_operand.vmem [shape: bf16[2,64,16], index: 0, kind: input, shape index: {}]
  %s1 = inlined_call_operand.vmem [shape: f32[2,64,8], index: 1, kind: input, shape index: {}]
  %s2 = inlined_call_operand.vmem [shape: bf16[16,24], index: 2, kind: input, shape index: {}]
  %s3 = inlined_call_operand.vmem [shape: bf16[3,64,64], index: 3, kind: input, shape index: {}]
  %s4 = inlined_call_operand.vmem [shape: f32[64,1], index: 4, kind: input, shape index: {}]
  %s5 = inlined_call_operand.hbm [shape: f32[2,1,16], index: 5, kind: output, shape index: {}]
  %s6 = sld [smem:[#allocation0]]
  $region53: #{tpu_custom_call.1} parent=0
    _
  %s8 = ssub.s32 1, %s6
  %s9 = scalar_select 0, %s8, %s6
  $region1: #{tpu_custom_call.1} parent=0
    #allocation2 [shape = 'u8[1024]{0}', space=vmem, size = 0x400, scoped, tag = 'output window, operand 0']
    #allocation3 [shape = 's32[2]{0}', space=sflag, size = 0x8, scoped, tag = 'scoped memory for tpu_custom_call.1']
    %10 = vsyncpa [#allocation3], 0
    %s11 = scalar_lea.sflag [#allocation3], 1
    %12 = vsyncpa %s11, 0
    loop: start=0, step=1, limit=4
    $region2: #{tpu_custom_call.1} parent=1 // loop_pre_header
      _
    $region3: #{tpu_custom_call.1} parent=1 // loop_header
      %s14 = sphi 0, %s18
      %p15 = scmp.ge.s32.totalorder %s14, 4
      %s24 = sphi 0, %s26
      %s27 = sphi 0, %s24
      %s28 = sphi 0, %s27
      %s44 = sphi 0, %s28
      %s50 = sphi 0, %s52
      %s53 = sphi 0, %s50
      %s54 = sphi 0, %s53
      %s70 = sphi 0, %s54
      %s74 = sphi 0, %s74
      %s76 = sphi 0, %s74
      %s77 = sphi 0, %s76
      %s91 = sphi 0, %s77
      %s95 = sphi 0, %s95
      %s97 = sphi 0, %s95
      %s98 = sphi 0, %s97
      %s112 = sphi 0, %s98
      %s116 = sphi 0, %s116
      %s118 = sphi 0, %s116
      %s119 = sphi 0, %s118
      %s133 = sphi 0, %s119
      %s139 = sphi 0, %s141
      %s142 = sphi 0, %s139
      %s143 = sphi 0, %s142
      %s159 = sphi 0, %s143
    $region4: #{tpu_custom_call.1} parent=1 // loop_header_branch
      %17 = sbr.rel (%p15) target = $region8
    $region5: #{tpu_custom_call.1} parent=1 // loop_body
      %s19 = ssub.s32 %s14, 1
      %s20 = ssub.s32 %s14, 2
      %s21 = sadd.s32 %s14, 1
      %s22 = ssub.s32 %s14, %s21
      %p23 = scmp.eq.s32.totalorder %s22, 0
      %s25 = sadd.s32 %s24, 1
      %s26 = scalar_select %p23, %s24, %s25
      %p29 = pneg %p23
      %p30 = scmp.eq.s32.totalorder %s14, 1
      %p31 = por %p29, %p30
      %p32 = scmp.ne.s32.totalorder %s24, %s27
      %p33 = scmp.eq.s32.totalorder %s14, 0
      %p34 = por %p32, %p33
      %p35 = scmp.ne.s32.totalorder %s24, %s27
      %p36 = scmp.eq.s32.totalorder %s19, 1
      %p37 = por %p35, %p36
      %p38 = scmp.ne.s32.totalorder %s27, %s28
      %p39 = scmp.eq.s32.totalorder %s19, 0
      %p40 = por %p38, %p39
      %p41 = scmp.ne.s32.totalorder %s27, %s28
      %p42 = scmp.eq.s32.totalorder %s20, 1
      %p43 = por %p41, %p42
      %p45 = scmp.ne.s32.totalorder %s28, %s44
      %p46 = scmp.eq.s32.totalorder %s20, 0
      %p47 = por %p45, %p46
      %s48 = ssub.s32 %s14, %s21
      %p49 = scmp.eq.s32.totalorder %s48, 0
      %s51 = sadd.s32 %s50, 1
      %s52 = scalar_select %p49, %s50, %s51
      %p55 = pneg %p49
      %p56 = scmp.eq.s32.totalorder %s14, 1
      %p57 = por %p55, %p56
      %p58 = scmp.ne.s32.totalorder %s50, %s53
      %p59 = scmp.eq.s32.totalorder %s14, 0
      %p60 = por %p58, %p59
      %p61 = scmp.ne.s32.totalorder %s50, %s53
      %p62 = scmp.eq.s32.totalorder %s19, 1
      %p63 = por %p61, %p62
      %p64 = scmp.ne.s32.totalorder %s53, %s54
      %p65 = scmp.eq.s32.totalorder %s19, 0
      %p66 = por %p64, %p65
      %p67 = scmp.ne.s32.totalorder %s53, %s54
      %p68 = scmp.eq.s32.totalorder %s20, 1
      %p69 = por %p67, %p68
      %p71 = scmp.ne.s32.totalorder %s54, %s70
      %p72 = scmp.eq.s32.totalorder %s20, 0
      %p73 = por %p71, %p72
      %s75 = sadd.s32 %s74, 1
      %p78 = scmp.eq.s32.totalorder %s14, 1
      %p79 = scmp.ne.s32.totalorder %s74, %s76
      %p80 = scmp.eq.s32.totalorder %s14, 0
      %p81 = por %p79, %p80
      %p82 = scmp.ne.s32.totalorder %s74, %s76
      %p83 = scmp.eq.s32.totalorder %s19, 1
      %p84 = por %p82, %p83
      %p85 = scmp.ne.s32.totalorder %s76, %s77
      %p86 = scmp.eq.s32.totalorder %s19, 0
      %p87 = por %p85, %p86
      %p88 = scmp.ne.s32.totalorder %s76, %s77
      %p89 = scmp.eq.s32.totalorder %s20, 1
      %p90 = por %p88, %p89
      %p92 = scmp.ne.s32.totalorder %s77, %s91
      %p93 = scmp.eq.s32.totalorder %s20, 0
      %p94 = por %p92, %p93
      %s96 = sadd.s32 %s95, 1
      %p99 = scmp.eq.s32.totalorder %s14, 1
      %p100 = scmp.ne.s32.totalorder %s95, %s97
      %p101 = scmp.eq.s32.totalorder %s14, 0
      %p102 = por %p100, %p101
      %p103 = scmp.ne.s32.totalorder %s95, %s97
      %p104 = scmp.eq.s32.totalorder %s19, 1
      %p105 = por %p103, %p104
      %p106 = scmp.ne.s32.totalorder %s97, %s98
      %p107 = scmp.eq.s32.totalorder %s19, 0
      %p108 = por %p106, %p107
      %p109 = scmp.ne.s32.totalorder %s97, %s98
      %p110 = scmp.eq.s32.totalorder %s20, 1
      %p111 = por %p109, %p110
      %p113 = scmp.ne.s32.totalorder %s98, %s112
      %p114 = scmp.eq.s32.totalorder %s20, 0
      %p115 = por %p113, %p114
      %s117 = sadd.s32 %s116, 1
      %p120 = scmp.eq.s32.totalorder %s14, 1
      %p121 = scmp.ne.s32.totalorder %s116, %s118
      %p122 = scmp.eq.s32.totalorder %s14, 0
      %p123 = por %p121, %p122
      %p124 = scmp.ne.s32.totalorder %s116, %s118
      %p125 = scmp.eq.s32.totalorder %s19, 1
      %p126 = por %p124, %p125
      %p127 = scmp.ne.s32.totalorder %s118, %s119
      %p128 = scmp.eq.s32.totalorder %s19, 0
      %p129 = por %p127, %p128
      %p130 = scmp.ne.s32.totalorder %s118, %s119
      %p131 = scmp.eq.s32.totalorder %s20, 1
      %p132 = por %p130, %p131
      %p134 = scmp.ne.s32.totalorder %s119, %s133
      %p135 = scmp.eq.s32.totalorder %s20, 0
      %p136 = por %p134, %p135
      %s137 = ssub.s32 %s14, %s21
      %p138 = scmp.eq.s32.totalorder %s137, 0
      %s140 = sadd.s32 %s139, 1
      %s141 = scalar_select %p138, %s139, %s140
      %p144 = pneg %p138
      %p145 = scmp.eq.s32.totalorder %s14, 1
      %p146 = por %p144, %p145
      %p147 = scmp.ne.s32.totalorder %s139, %s142
      %p148 = scmp.eq.s32.totalorder %s14, 0
      %p149 = por %p147, %p148
      %p150 = scmp.ne.s32.totalorder %s139, %s142
      %p151 = scmp.eq.s32.totalorder %s19, 1
      %p152 = por %p150, %p151
      %p153 = scmp.ne.s32.totalorder %s142, %s143
      %p154 = scmp.eq.s32.totalorder %s19, 0
      %p155 = por %p153, %p154
      %p156 = scmp.ne.s32.totalorder %s142, %s143
      %p157 = scmp.eq.s32.totalorder %s20, 1
      %p158 = por %p156, %p157
      %p160 = scmp.ne.s32.totalorder %s143, %s159
      %p161 = scmp.eq.s32.totalorder %s20, 0
      %p162 = por %p160, %p161
      %p163 = scmp.le.s32.totalorder 1, %s14
      %p164 = scmp.lt.s32.totalorder %s14, 3
      %p165 = pnand %p163, %p164
      %p166 = pneg %p165
      // Predicated region
      $region9: #{tpu_custom_call.1} parent=5 // pred_check
        _
      $region10: #{tpu_custom_call.1} parent=5 // pred_check_branch
        %168 = sbr.rel (%p165) target = $region12
      $region11: #{tpu_custom_call.1} parent=5 // pred_region
        %s169 = ssub.s32 %s14, 1
        // Predicated region
        $region13: #{tpu_custom_call.1} parent=11 // pred_check
          %p170 = pneg %p87
        $region14: #{tpu_custom_call.1} parent=11 // pred_check_branch
          %172 = sbr.rel (%p170) target = $region16
        $region15: #{tpu_custom_call.1} parent=11 // pred_region
          _
        $region16: #{tpu_custom_call.1} parent=11 // pred_fallthru
          _
        // Predicated region
        $region17: #{tpu_custom_call.1} parent=11 // pred_check
          %p173 = pneg %p108
        $region18: #{tpu_custom_call.1} parent=11 // pred_check_branch
          %175 = sbr.rel (%p173) target = $region20
        $region19: #{tpu_custom_call.1} parent=11 // pred_region
          _
        $region20: #{tpu_custom_call.1} parent=11 // pred_fallthru
          _
        // Predicated region
        $region21: #{tpu_custom_call.1} parent=11 // pred_check
          %p176 = pneg %p129
        $region22: #{tpu_custom_call.1} parent=11 // pred_check_branch
          %178 = sbr.rel (%p176) target = $region24
        $region23: #{tpu_custom_call.1} parent=11 // pred_region
          _
        $region24: #{tpu_custom_call.1} parent=11 // pred_fallthru
          _
      $region12: #{tpu_custom_call.1} parent=5 // pred_fallthru
        _
      %p179 = scmp.lt.s32.totalorder %s14, 2
      // Predicated region
      $region25: #{tpu_custom_call.1} parent=5 // pred_check
        %p180 = pneg %p179
      $region26: #{tpu_custom_call.1} parent=5 // pred_check_branch
        %182 = sbr.rel (%p180) target = $region28
      $region27: #{tpu_custom_call.1} parent=5 // pred_region
        // Predicated region
        $region29: #{tpu_custom_call.1} parent=27 // pred_check
          %p183 = pneg %p34
        $region30: #{tpu_custom_call.1} parent=27 // pred_check_branch
          %185 = sbr.rel (%p183) target = $region32
        $region31: #{tpu_custom_call.1} parent=27 // pred_region
          %p186 = scmp.lt.s32.totalorder %s14, 1
          %s187 = scalar_select %p186, %s14, 1
          %s188 = smul.addr %s187, 8
          %s189 = smul.addr %s188, 4
          %s190 = scalar_lea.vmem %s0, %s189
        $region32: #{tpu_custom_call.1} parent=27 // pred_fallthru
          _
        // Predicated region
        $region33: #{tpu_custom_call.1} parent=27 // pred_check
          %p191 = pneg %p60
        $region34: #{tpu_custom_call.1} parent=27 // pred_check_branch
          %193 = sbr.rel (%p191) target = $region36
        $region35: #{tpu_custom_call.1} parent=27 // pred_region
          %p194 = scmp.lt.s32.totalorder %s14, 1
          %s195 = scalar_select %p194, %s14, 1
          %s196 = smul.addr %s195, 8
          %s197 = smul.addr %s196, 8
          %s198 = scalar_lea.vmem %s1, %s197
        $region36: #{tpu_custom_call.1} parent=27 // pred_fallthru
          _
      $region28: #{tpu_custom_call.1} parent=5 // pred_fallthru
        _
      %p199 = scmp.le.s32.totalorder 1, %s14
      %p200 = scmp.lt.s32.totalorder %s14, 3
      %p201 = pnand %p199, %p200
      %p202 = pneg %p201
      // Predicated region
      $region37: #{tpu_custom_call.1} parent=5 // pred_check
        _
      $region38: #{tpu_custom_call.1} parent=5 // pred_check_branch
        %204 = sbr.rel (%p201) target = $region40
      $region39: #{tpu_custom_call.1} parent=5 // pred_region
        %s205 = ssub.s32 %s14, 1
        %p206 = scmp.lt.s32.totalorder %s19, 1
        %s207 = scalar_select %p206, %s19, 1
        %s208 = smul.addr %s207, 8
        %s209 = smul.addr %s208, 4
        %s210 = scalar_lea.vmem %s0, %s209
        %p211 = pneg %p40
        %p212 = pneg %p37
        %p213 = scmp.lt.s32.totalorder %s19, 1
        %s214 = scalar_select %p213, %s19, 1
        %s215 = smul.addr %s214, 8
        %s216 = smul.addr %s215, 8
        %s217 = scalar_lea.vmem %s1, %s216
        %p218 = pneg %p66
        %p219 = pneg %p63
        %p220 = pneg %p87
        %p221 = pneg %p84
        %p222 = pneg %p108
        %p223 = pneg %p105
        %p224 = pneg %p129
        %p225 = pneg %p126
        %p226 = pneg %p155
        %p227 = pneg %p152
        %s228 = sand.u32 %s142, 1
        %s229 = scalar_lea.sflag [#allocation3], %s228
        %s230 = sand.u32 %s142, 1
        %s231 = scalar_lea.vmem [#allocation2], %s230
        %p232 = scmp.lt.s32.totalorder %s19, 1
        %s233 = scalar_select %p232, %s19, 1
        %s234 = smul.addr %s233, 8
        %s235 = smul.addr %s234, 4
        %s236 = scalar_lea.vmem %s0, %s235
        %p237 = scmp.lt.s32.totalorder %s19, 1
        %s238 = scalar_select %p237, %s19, 1
        %s239 = smul.addr %s238, 8
        %s240 = smul.addr %s239, 8
        %s241 = scalar_lea.vmem %s1, %s240
        %v243 = vld [vmem:[%s236] sm:$0xf]
        %v244 = vld [vmem:[%s236 + $0x4] sm:$0xf]
        %v245 = vld [vmem:[%s236 + $0x8] sm:$0xf]
        %v246 = vld [vmem:[%s236 + $0xc] sm:$0xf]
        %v247 = vld [vmem:[%s236 + $0x10] sm:$0xf]
        %v248 = vld [vmem:[%s236 + $0x14] sm:$0xf]
        %v249 = vld [vmem:[%s236 + $0x18] sm:$0xf]
        %v250 = vld [vmem:[%s236 + $0x1c] sm:$0xf]
        %v251 = vld [vmem:[%s2] sm:$0xf]
        %v252 = vld [vmem:[%s2 + $0x4] sm:$0xf]
        %v261 = vunpack.c.l.b16 %v243
        %v262 = vunpack.c.l.b16 %v244
        %v263 = vunpack.c.l.b16 %v245
        %v264 = vunpack.c.l.b16 %v246
        %v265 = vunpack.c.l.b16 %v247
        %v266 = vunpack.c.l.b16 %v248
        %v267 = vunpack.c.l.b16 %v249
        %v268 = vunpack.c.l.b16 %v250
        %v269 = vpack.c.b16 %v262, %v261
        %v270 = vpack.c.b16 %v264, %v263
        %v271 = vpack.c.b16 %v266, %v265
        %v272 = vpack.c.b16 %v268, %v267
        %v275 = vunpack.c.l.b16 %v251
        %v276 = vunpack.c.l.b16 %v252
        %v277 = vpack.c.b16 %v276, %v275
        %vm279 = vcmask 130048
        %v281 = vsel %vm279, %v269, 0
        %v284 = vsel %vm279, %v270, 0
        %v287 = vsel %vm279, %v271, 0
        %v290 = vsel %vm279, %v272, 0
        %292 = vmatprep.subr.bf16.mxu0 0
        %293 = vmatpush1.bf16.msra.mxu0 %v277
        %294 = vmatprep.subr.bf16.mxu0 0
        %295 = vmatpush1.bf16.msra.mxu0 0
        %296 = vmatprep.subr.bf16.mxu0 0
        %297 = vmatpush1.bf16.msra.mxu0 0
        %298 = vmatprep.subr.bf16.mxu0 0
        %299 = vmatpush1.bf16.msra.mxu0 0
        %300 = vmatprep.subr.bf16.mxu0 0
        %301 = vmatpush1.bf16.msra.mxu0 0
        %302 = vmatprep.subr.bf16.mxu0 0
        %303 = vmatpush1.bf16.msra.mxu0 0
        %304 = vmatprep.subr.bf16.mxu0 0
        %305 = vmatpush1.bf16.msra.mxu0 0
        %306 = vmatprep.subr.bf16.mxu0 0
        %307 = vmatpush1.bf16.msra.mxu0 0
        %308 = vmatprep.subr.bf16.mxu0 0
        %309 = vmatpush1.bf16.msra.mxu0 0
        %310 = vmatprep.subr.bf16.mxu0 0
        %311 = vmatpush1.bf16.msra.mxu0 0
        %312 = vmatprep.subr.bf16.mxu0 0
        %313 = vmatpush1.bf16.msra.mxu0 0
        %314 = vmatprep.subr.bf16.mxu0 0
        %315 = vmatpush1.bf16.msra.mxu0 0
        %316 = vmatprep.subr.bf16.mxu0 0
        %317 = vmatpush1.bf16.msra.mxu0 0
        %318 = vmatprep.subr.bf16.mxu0 0
        %319 = vmatpush1.bf16.msra.mxu0 0
        %320 = vmatprep.subr.bf16.mxu0 0
        %321 = vmatpush1.bf16.msra.mxu0 0
        %322 = vmatprep.subr.bf16.mxu0 0
        %323 = vmatpush1.bf16.msra.mxu0 0
        %324 = vmatprep.mubr.bf16.mxu0 0
        %325 = vmatmul.mubr.bf16.gmra.mrb[0].mxu0 %v281
        %v326 = vpop.f32.mrb[0].mxu0
        %v327 = vadd.f32 0.0, %v326
        %v328 = vpop.f32.mrb[0].mxu0
        %v329 = vpop.f32.mrb[0].mxu0
        %v330 = vadd.f32 0.0, %v329
        %v331 = vpop.f32.mrb[0].mxu0
        %332 = vmatprep.mubr.bf16.mxu0 0
        %333 = vmatmul.mubr.bf16.gmra.mrb[0].mxu0 %v284
        %v334 = vpop.f32.mrb[0].mxu0
        %v335 = vadd.f32 0.0, %v334
        %v336 = vpop.f32.mrb[0].mxu0
        %v337 = vpop.f32.mrb[0].mxu0
        %v338 = vadd.f32 0.0, %v337
        %v339 = vpop.f32.mrb[0].mxu0
        %340 = vmatprep.mubr.bf16.mxu0 0
        %341 = vmatmul.mubr.bf16.gmra.mrb[0].mxu0 %v287
        %v342 = vpop.f32.mrb[0].mxu0
        %v343 = vadd.f32 0.0, %v342
        %v344 = vpop.f32.mrb[0].mxu0
        %v345 = vpop.f32.mrb[0].mxu0
        %v346 = vadd.f32 0.0, %v345
        %v347 = vpop.f32.mrb[0].mxu0
        %348 = vmatprep.mubr.bf16.mxu0 0
        %349 = vmatmul.mubr.bf16.gmra.mrb[0].mxu0 %v290
        %v350 = vpop.f32.mrb[0].mxu0
        %v351 = vadd.f32 0.0, %v350
        %v352 = vpop.f32.mrb[0].mxu0
        %v353 = vpop.f32.mrb[0].mxu0
        %v354 = vadd.f32 0.0, %v353
        %v355 = vpop.f32.mrb[0].mxu0
        %356 = vdwg.mxu0
        %v357 = vpack.c.bf16 %v330, %v327
        %v358 = vpack.c.bf16 %v338, %v335
        %v359 = vpack.c.bf16 %v346, %v343
        %v360 = vpack.c.bf16 %v354, %v351
        %v361 = vld [vmem:[%s3] sm:$0xf]
        %v362 = vld [vmem:[%s3 + $0x4] sm:$0xf]
        %v363 = vld [vmem:[%s3 + $0x8] sm:$0xf]
        %v364 = vld [vmem:[%s3 + $0xc] sm:$0xf]
        %v365 = vld [vmem:[%s3 + $0x10] sm:$0xf]
        %v366 = vld [vmem:[%s3 + $0x14] sm:$0xf]
        %v367 = vld [vmem:[%s3 + $0x18] sm:$0xf]
        %v368 = vld [vmem:[%s3 + $0x1c] sm:$0xf]
        %v369 = vld [vmem:[%s3 + $0x20] sm:$0xf]
        %v370 = vld [vmem:[%s3 + $0x24] sm:$0xf]
        %v371 = vld [vmem:[%s3 + $0x28] sm:$0xf]
        %v372 = vld [vmem:[%s3 + $0x2c] sm:$0xf]
        %v373 = vld [vmem:[%s3 + $0x30] sm:$0xf]
        %v374 = vld [vmem:[%s3 + $0x34] sm:$0xf]
        %v375 = vld [vmem:[%s3 + $0x38] sm:$0xf]
        %v376 = vld [vmem:[%s3 + $0x3c] sm:$0xf]
        %v377 = vld [vmem:[%s3 + $0x40] sm:$0xf]
        %v378 = vld [vmem:[%s3 + $0x44] sm:$0xf]
        %v379 = vld [vmem:[%s3 + $0x48] sm:$0xf]
        %v380 = vld [vmem:[%s3 + $0x4c] sm:$0xf]
        %v381 = vld [vmem:[%s3 + $0x50] sm:$0xf]
        %v382 = vld [vmem:[%s3 + $0x54] sm:$0xf]
        %v383 = vld [vmem:[%s3 + $0x58] sm:$0xf]
        %v384 = vld [vmem:[%s3 + $0x5c] sm:$0xf]
        %v393 = vunpack.c.l.b16 %v369
        %v394 = vunpack.c.l.b16 %v370
        %v395 = vunpack.c.l.b16 %v371
        %v396 = vunpack.c.l.b16 %v372
        %v397 = vunpack.c.l.b16 %v373
        %v398 = vunpack.c.l.b16 %v374
        %v399 = vunpack.c.l.b16 %v375
        %v400 = vunpack.c.l.b16 %v376
        %v401 = vpack.c.b16 %v394, %v393
        %v402 = vpack.c.b16 %v396, %v395
        %v403 = vpack.c.b16 %v398, %v397
        %v404 = vpack.c.b16 %v400, %v399
        %409 = vrot.lane.b32.xlu0 %v357, 120
        %v410 = vpop.permute.xlu0 %409
        %411 = vrot.lane.b32.xlu0 %v358, 120
        %v412 = vpop.permute.xlu0 %411
        %413 = vrot.lane.b32.xlu0 %v359, 120
        %v414 = vpop.permute.xlu0 %413
        %415 = vrot.lane.b32.xlu0 %v360, 120
        %v416 = vpop.permute.xlu0 %415
        %vm421 = vcmask 523264
        %v423 = vsel %vm421, %v401, 0
        %v426 = vsel %vm421, %v402, 0
        %v429 = vsel %vm421, %v403, 0
        %v432 = vsel %vm421, %v404, 0
        %434 = vmatprep.subr.bf16.mxu0 0
        %435 = vmatpush1.bf16.msra.mxu0 %v410
        %436 = vmatprep.subr.bf16.mxu0 0
        %437 = vmatpush1.bf16.msra.mxu0 %v412
        %438 = vmatprep.subr.bf16.mxu0 0
        %439 = vmatpush1.bf16.msra.mxu0 %v414
        %440 = vmatprep.subr.bf16.mxu0 0
        %441 = vmatpush1.bf16.msra.mxu0 %v416
        %442 = vmatprep.subr.bf16.mxu0 0
        %443 = vmatpush1.bf16.msra.mxu0 0
        %444 = vmatprep.subr.bf16.mxu0 0
        %445 = vmatpush1.bf16.msra.mxu0 0
        %446 = vmatprep.subr.bf16.mxu0 0
        %447 = vmatpush1.bf16.msra.mxu0 0
        %448 = vmatprep.subr.bf16.mxu0 0
        %449 = vmatpush1.bf16.msra.mxu0 0
        %450 = vmatprep.subr.bf16.mxu0 0
        %451 = vmatpush1.bf16.msra.mxu0 0
        %452 = vmatprep.subr.bf16.mxu0 0
        %453 = vmatpush1.bf16.msra.mxu0 0
        %454 = vmatprep.subr.bf16.mxu0 0
        %455 = vmatpush1.bf16.msra.mxu0 0
        %456 = vmatprep.subr.bf16.mxu0 0
        %457 = vmatpush1.bf16.msra.mxu0 0
        %458 = vmatprep.subr.bf16.mxu0 0
        %459 = vmatpush1.bf16.msra.mxu0 0
        %460 = vmatprep.subr.bf16.mxu0 0
        %461 = vmatpush1.bf16.msra.mxu0 0
        %462 = vmatprep.subr.bf16.mxu0 0
        %463 = vmatpush1.bf16.msra.mxu0 0
        %464 = vmatprep.subr.bf16.mxu0 0
        %465 = vmatpush1.bf16.msra.mxu0 0
        %466 = vmatprep.mubr.bf16.mxu0 0
        %467 = vmatmul.mubr.bf16.gmra.mrb[0].mxu0 %v423
        %v468 = vpop.f32.mrb[0].mxu0
        %v469 = vadd.f32 0.0, %v468
        %v470 = vpop.f32.mrb[0].mxu0
        %v471 = vpop.f32.mrb[0].mxu0
        %v472 = vadd.f32 0.0, %v471
        %v473 = vpop.f32.mrb[0].mxu0
        %474 = vmatprep.mubr.bf16.mxu0 0
        %475 = vmatmul.mubr.bf16.gmra.mrb[0].mxu0 %v426
        %v476 = vpop.f32.mrb[0].mxu0
        %v477 = vadd.f32 0.0, %v476
        %v478 = vpop.f32.mrb[0].mxu0
        %v479 = vpop.f32.mrb[0].mxu0
        %v480 = vadd.f32 0.0, %v479
        %v481 = vpop.f32.mrb[0].mxu0
        %482 = vmatprep.mubr.bf16.mxu0 0
        %483 = vmatmul.mubr.bf16.gmra.mrb[0].mxu0 %v429
        %v484 = vpop.f32.mrb[0].mxu0
        %v485 = vadd.f32 0.0, %v484
        %v486 = vpop.f32.mrb[0].mxu0
        %v487 = vpop.f32.mrb[0].mxu0
        %v488 = vadd.f32 0.0, %v487
        %v489 = vpop.f32.mrb[0].mxu0
        %490 = vmatprep.mubr.bf16.mxu0 0
        %491 = vmatmul.mubr.bf16.gmra.mrb[0].mxu0 %v432
        %v492 = vpop.f32.mrb[0].mxu0
        %v493 = vadd.f32 0.0, %v492
        %v494 = vpop.f32.mrb[0].mxu0
        %v495 = vpop.f32.mrb[0].mxu0
        %v496 = vadd.f32 0.0, %v495
        %v497 = vpop.f32.mrb[0].mxu0
        %498 = vdwg.mxu0
        %v507 = vunpack.c.l.b16 %v361
        %v508 = vunpack.c.l.b16 %v362
        %v509 = vunpack.c.l.b16 %v363
        %v510 = vunpack.c.l.b16 %v364
        %v511 = vunpack.c.l.b16 %v365
        %v512 = vunpack.c.l.b16 %v366
        %v513 = vunpack.c.l.b16 %v367
        %v514 = vunpack.c.l.b16 %v368
        %v515 = vpack.c.b16 %v508, %v507
        %v516 = vpack.c.b16 %v510, %v509
        %v517 = vpack.c.b16 %v512, %v511
        %v518 = vpack.c.b16 %v514, %v513
        %v520 = vsel %vm421, %v515, 0
        %v523 = vsel %vm421, %v516, 0
        %v526 = vsel %vm421, %v517, 0
        %v529 = vsel %vm421, %v518, 0
        %531 = vmatprep.subr.bf16.mxu0 0
        %532 = vmatpush1.bf16.msra.mxu0 %v357
        %533 = vmatprep.subr.bf16.mxu0 0
        %534 = vmatpush1.bf16.msra.mxu0 %v358
        %535 = vmatprep.subr.bf16.mxu0 0
        %536 = vmatpush1.bf16.msra.mxu0 %v359
        %537 = vmatprep.subr.bf16.mxu0 0
        %538 = vmatpush1.bf16.msra.mxu0 %v360
        %539 = vmatprep.subr.bf16.mxu0 0
        %540 = vmatpush1.bf16.msra.mxu0 0
        %541 = vmatprep.subr.bf16.mxu0 0
        %542 = vmatpush1.bf16.msra.mxu0 0
        %543 = vmatprep.subr.bf16.mxu0 0
        %544 = vmatpush1.bf16.msra.mxu0 0
        %545 = vmatprep.subr.bf16.mxu0 0
        %546 = vmatpush1.bf16.msra.mxu0 0
        %547 = vmatprep.subr.bf16.mxu0 0
        %548 = vmatpush1.bf16.msra.mxu0 0
        %549 = vmatprep.subr.bf16.mxu0 0
        %550 = vmatpush1.bf16.msra.mxu0 0
        %551 = vmatprep.subr.bf16.mxu0 0
        %552 = vmatpush1.bf16.msra.mxu0 0
        %553 = vmatprep.subr.bf16.mxu0 0
        %554 = vmatpush1.bf16.msra.mxu0 0
        %555 = vmatprep.subr.bf16.mxu0 0
        %556 = vmatpush1.bf16.msra.mxu0 0
        %557 = vmatprep.subr.bf16.mxu0 0
        %558 = vmatpush1.bf16.msra.mxu0 0
        %559 = vmatprep.subr.bf16.mxu0 0
        %560 = vmatpush1.bf16.msra.mxu0 0
        %561 = vmatprep.subr.bf16.mxu0 0
        %562 = vmatpush1.bf16.msra.mxu0 0
        %563 = vmatprep.mubr.bf16.mxu0 0
        %564 = vmatmul.mubr.bf16.gmra.mrb[0].mxu0 %v520
        %v565 = vpop.f32.mrb[0].mxu0
        %v566 = vadd.f32 %v469, %v565
        %v567 = vpop.f32.mrb[0].mxu0
        %v568 = vpop.f32.mrb[0].mxu0
        %v569 = vadd.f32 %v472, %v568
        %v570 = vpop.f32.mrb[0].mxu0
        %571 = vmatprep.mubr.bf16.mxu0 0
        %572 = vmatmul.mubr.bf16.gmra.mrb[0].mxu0 %v523
        %v573 = vpop.f32.mrb[0].mxu0
        %v574 = vadd.f32 %v477, %v573
        %v575 = vpop.f32.mrb[0].mxu0
        %v576 = vpop.f32.mrb[0].mxu0
        %v577 = vadd.f32 %v480, %v576
        %v578 = vpop.f32.mrb[0].mxu0
        %579 = vmatprep.mubr.bf16.mxu0 0
        %580 = vmatmul.mubr.bf16.gmra.mrb[0].mxu0 %v526
        %v581 = vpop.f32.mrb[0].mxu0
        %v582 = vadd.f32 %v485, %v581
        %v583 = vpop.f32.mrb[0].mxu0
        %v584 = vpop.f32.mrb[0].mxu0
        %v585 = vadd.f32 %v488, %v584
        %v586 = vpop.f32.mrb[0].mxu0
        %587 = vmatprep.mubr.bf16.mxu0 0
        %588 = vmatmul.mubr.bf16.gmra.mrb[0].mxu0 %v529
        %v589 = vpop.f32.mrb[0].mxu0
        %v590 = vadd.f32 %v493, %v589
        %v591 = vpop.f32.mrb[0].mxu0
        %v592 = vpop.f32.mrb[0].mxu0
        %v593 = vadd.f32 %v496, %v592
        %v594 = vpop.f32.mrb[0].mxu0
        %595 = vdwg.mxu0
        %v604 = vunpack.c.l.b16 %v377
        %v605 = vunpack.c.l.b16 %v378
        %v606 = vunpack.c.l.b16 %v379
        %v607 = vunpack.c.l.b16 %v380
        %v608 = vunpack.c.l.b16 %v381
        %v609 = vunpack.c.l.b16 %v382
        %v610 = vunpack.c.l.b16 %v383
        %v611 = vunpack.c.l.b16 %v384
        %v612 = vpack.c.b16 %v605, %v604
        %v613 = vpack.c.b16 %v607, %v606
        %v614 = vpack.c.b16 %v609, %v608
        %v615 = vpack.c.b16 %v611, %v610
        %616 = vrot.lane.b32.xlu0 %v357, 112
        %v617 = vpop.permute.xlu0 %616
        %618 = vrot.lane.b32.xlu0 %v358, 112
        %v619 = vpop.permute.xlu0 %618
        %620 = vrot.lane.b32.xlu0 %v359, 112
        %v621 = vpop.permute.xlu0 %620
        %622 = vrot.lane.b32.xlu0 %v360, 112
        %v623 = vpop.permute.xlu0 %622
        %v629 = vsel %vm421, %v612, 0
        %v632 = vsel %vm421, %v613, 0
        %v635 = vsel %vm421, %v614, 0
        %v638 = vsel %vm421, %v615, 0
        %640 = vmatprep.subr.bf16.mxu0 0
        %641 = vmatpush1.bf16.msra.mxu0 %v617
        %642 = vmatprep.subr.bf16.mxu0 0
        %643 = vmatpush1.bf16.msra.mxu0 %v619
        %644 = vmatprep.subr.bf16.mxu0 0
        %645 = vmatpush1.bf16.msra.mxu0 %v621
        %646 = vmatprep.subr.bf16.mxu0 0
        %647 = vmatpush1.bf16.msra.mxu0 %v623
        %648 = vmatprep.subr.bf16.mxu0 0
        %649 = vmatpush1.bf16.msra.mxu0 0
        %650 = vmatprep.subr.bf16.mxu0 0
        %651 = vmatpush1.bf16.msra.mxu0 0
        %652 = vmatprep.subr.bf16.mxu0 0
        %653 = vmatpush1.bf16.msra.mxu0 0
        %654 = vmatprep.subr.bf16.mxu0 0
        %655 = vmatpush1.bf16.msra.mxu0 0
        %656 = vmatprep.subr.bf16.mxu0 0
        %657 = vmatpush1.bf16.msra.mxu0 0
        %658 = vmatprep.subr.bf16.mxu0 0
        %659 = vmatpush1.bf16.msra.mxu0 0
        %660 = vmatprep.subr.bf16.mxu0 0
        %661 = vmatpush1.bf16.msra.mxu0 0
        %662 = vmatprep.subr.bf16.mxu0 0
        %663 = vmatpush1.bf16.msra.mxu0 0
        %664 = vmatprep.subr.bf16.mxu0 0
        %665 = vmatpush1.bf16.msra.mxu0 0
        %666 = vmatprep.subr.bf16.mxu0 0
        %667 = vmatpush1.bf16.msra.mxu0 0
        %668 = vmatprep.subr.bf16.mxu0 0
        %669 = vmatpush1.bf16.msra.mxu0 0
        %670 = vmatprep.subr.bf16.mxu0 0
        %671 = vmatpush1.bf16.msra.mxu0 0
        %672 = vmatprep.mubr.bf16.mxu0 0
        %673 = vmatmul.mubr.bf16.gmra.mrb[0].mxu0 %v629
        %v674 = vpop.f32.mrb[0].mxu0
        %v675 = vadd.f32 0.0, %v674
        %v676 = vpop.f32.mrb[0].mxu0
        %v677 = vpop.f32.mrb[0].mxu0
        %v678 = vadd.f32 0.0, %v677
        %v679 = vpop.f32.mrb[0].mxu0
        %680 = vmatprep.mubr.bf16.mxu0 0
        %681 = vmatmul.mubr.bf16.gmra.mrb[0].mxu0 %v632
        %v682 = vpop.f32.mrb[0].mxu0
        %v683 = vadd.f32 0.0, %v682
        %v684 = vpop.f32.mrb[0].mxu0
        %v685 = vpop.f32.mrb[0].mxu0
        %v686 = vadd.f32 0.0, %v685
        %v687 = vpop.f32.mrb[0].mxu0
        %688 = vmatprep.mubr.bf16.mxu0 0
        %689 = vmatmul.mubr.bf16.gmra.mrb[0].mxu0 %v635
        %v690 = vpop.f32.mrb[0].mxu0
        %v691 = vadd.f32 0.0, %v690
        %v692 = vpop.f32.mrb[0].mxu0
        %v693 = vpop.f32.mrb[0].mxu0
        %v694 = vadd.f32 0.0, %v693
        %v695 = vpop.f32.mrb[0].mxu0
        %696 = vmatprep.mubr.bf16.mxu0 0
        %697 = vmatmul.mubr.bf16.gmra.mrb[0].mxu0 %v638
        %v698 = vpop.f32.mrb[0].mxu0
        %v699 = vadd.f32 0.0, %v698
        %v700 = vpop.f32.mrb[0].mxu0
        %v701 = vpop.f32.mrb[0].mxu0
        %v702 = vadd.f32 0.0, %v701
        %v703 = vpop.f32.mrb[0].mxu0
        %704 = vdwg.mxu0
        %v705 = vadd.f32 %v566, %v675
        %v706 = vadd.f32 %v569, %v678
        %v707 = vadd.f32 %v574, %v683
        %v708 = vadd.f32 %v577, %v686
        %v709 = vadd.f32 %v582, %v691
        %v710 = vadd.f32 %v585, %v694
        %v711 = vadd.f32 %v590, %v699
        %v712 = vadd.f32 %v593, %v702
        %v713 = vld [vmem:[%s4] sm:$0xff]
        %v714 = vld [vmem:[%s4 + $0x8] sm:$0xff]
        %v715 = vld [vmem:[%s4 + $0x10] sm:$0xff]
        %v716 = vld [vmem:[%s4 + $0x18] sm:$0xff]
        %v717 = vld [vmem:[%s4 + $0x20] sm:$0xff]
        %v718 = vld [vmem:[%s4 + $0x28] sm:$0xff]
        %v719 = vld [vmem:[%s4 + $0x30] sm:$0xff]
        %v720 = vld [vmem:[%s4 + $0x38] sm:$0xff]
        %722 = vset.pattern.permute.xlu0 0
        %723 = vperm.xlu0 %722, %v713
        %v724 = vpop.permute.xlu0 %723
        %727 = vset.pattern.permute.xlu0 0
        %728 = vperm.xlu0 %727, %v714
        %v729 = vpop.permute.xlu0 %728
        %732 = vset.pattern.permute.xlu0 0
        %733 = vperm.xlu0 %732, %v715
        %v734 = vpop.permute.xlu0 %733
        %737 = vset.pattern.permute.xlu0 0
        %738 = vperm.xlu0 %737, %v716
        %v739 = vpop.permute.xlu0 %738
        %742 = vset.pattern.permute.xlu0 0
        %743 = vperm.xlu0 %742, %v717
        %v744 = vpop.permute.xlu0 %743
        %747 = vset.pattern.permute.xlu0 0
        %748 = vperm.xlu0 %747, %v718
        %v749 = vpop.permute.xlu0 %748
        %752 = vset.pattern.permute.xlu0 0
        %753 = vperm.xlu0 %752, %v719
        %v754 = vpop.permute.xlu0 %753
        %757 = vset.pattern.permute.xlu0 0
        %758 = vperm.xlu0 %757, %v720
        %v759 = vpop.permute.xlu0 %758
        %v761 = vadd.f32 %v705, %v724
        %v762 = vadd.f32 %v706, %v729
        %v763 = vadd.f32 %v707, %v734
        %v764 = vadd.f32 %v708, %v739
        %v765 = vadd.f32 %v709, %v744
        %v766 = vadd.f32 %v710, %v749
        %v767 = vadd.f32 %v711, %v754
        %v768 = vadd.f32 %v712, %v759
        %v769 = vmax.f32 %v761, 0.0
        %v770 = vmax.f32 %v762, 0.0
        %v771 = vmax.f32 %v763, 0.0
        %v772 = vmax.f32 %v764, 0.0
        %v773 = vmax.f32 %v765, 0.0
        %v774 = vmax.f32 %v766, 0.0
        %v775 = vmax.f32 %v767, 0.0
        %v776 = vmax.f32 %v768, 0.0
        %v777 = vld [vmem:[%s241] sm:$0xff]
        %v778 = vld [vmem:[%s241 + $0x8] sm:$0xff]
        %v779 = vld [vmem:[%s241 + $0x10] sm:$0xff]
        %v780 = vld [vmem:[%s241 + $0x18] sm:$0xff]
        %v781 = vld [vmem:[%s241 + $0x20] sm:$0xff]
        %v782 = vld [vmem:[%s241 + $0x28] sm:$0xff]
        %v783 = vld [vmem:[%s241 + $0x30] sm:$0xff]
        %v784 = vld [vmem:[%s241 + $0x38] sm:$0xff]
        %v785 = vadd.f32 %v769, %v777
        %v786 = vadd.f32 %v770, %v778
        %v787 = vadd.f32 %v771, %v779
        %v788 = vadd.f32 %v772, %v780
        %v789 = vadd.f32 %v773, %v781
        %v790 = vadd.f32 %v774, %v782
        %v791 = vadd.f32 %v775, %v783
        %v792 = vadd.f32 %v776, %v784
        %vm793 = vcmask 64512
        %v794 = vsel %vm793, %v785, 0.0
        %795 = vadd.xlane.f32.xlu0 %v794
        %v796 = vpop.xlane.xlu0 %795
        %v797 = vsel %vm793, %v786, 0.0
        %798 = vadd.xlane.f32.xlu0 %v797
        %v799 = vpop.xlane.xlu0 %798
        %v800 = vsel %vm793, %v787, 0.0
        %801 = vadd.xlane.f32.xlu0 %v800
        %v802 = vpop.xlane.xlu0 %801
        %v803 = vsel %vm793, %v788, 0.0
        %804 = vadd.xlane.f32.xlu0 %v803
        %v805 = vpop.xlane.xlu0 %804
        %v806 = vsel %vm793, %v789, 0.0
        %807 = vadd.xlane.f32.xlu0 %v806
        %v808 = vpop.xlane.xlu0 %807
        %v809 = vsel %vm793, %v790, 0.0
        %810 = vadd.xlane.f32.xlu0 %v809
        %v811 = vpop.xlane.xlu0 %810
        %v812 = vsel %vm793, %v791, 0.0
        %813 = vadd.xlane.f32.xlu0 %v812
        %v814 = vpop.xlane.xlu0 %813
        %v815 = vsel %vm793, %v792, 0.0
        %816 = vadd.xlane.f32.xlu0 %v815
        %v817 = vpop.xlane.xlu0 %816
        %v826 = vlaneseq
        %v827 = vand.u32 %v826, 127
        %v828 = vlaneseq
        %v829 = vshrl.u32 %v828, 7
        %v830 = vsub.s32 %v827, %v829
        %v831 = vrot.slane %v796, %v830
        %v832 = vlaneseq
        %v833 = vshrl.u32 %v832, 7
        %v834 = vsub.s32 %v827, %v833
        %v835 = vrot.slane %v799, %v834
        %v836 = vlaneseq
        %v837 = vshrl.u32 %v836, 7
        %v838 = vsub.s32 %v827, %v837
        %v839 = vrot.slane %v802, %v838
        %v840 = vlaneseq
        %v841 = vshrl.u32 %v840, 7
        %v842 = vsub.s32 %v827, %v841
        %v843 = vrot.slane %v805, %v842
        %v844 = vlaneseq
        %v845 = vshrl.u32 %v844, 7
        %v846 = vsub.s32 %v827, %v845
        %v847 = vrot.slane %v808, %v846
        %v848 = vlaneseq
        %v849 = vshrl.u32 %v848, 7
        %v850 = vsub.s32 %v827, %v849
        %v851 = vrot.slane %v811, %v850
        %v852 = vlaneseq
        %v853 = vshrl.u32 %v852, 7
        %v854 = vsub.s32 %v827, %v853
        %v855 = vrot.slane %v814, %v854
        %v856 = vlaneseq
        %v857 = vshrl.u32 %v856, 7
        %v858 = vsub.s32 %v827, %v857
        %v859 = vrot.slane %v817, %v858
        %vm860 = vcmask 1041409
        %v861 = vsel %vm860, %v835, %v831
        %vm862 = vcmask 1042434
        %v863 = vsel %vm862, %v839, %v861
        %vm864 = vcmask 1043459
        %v865 = vsel %vm864, %v843, %v863
        %vm866 = vcmask 1044484
        %v867 = vsel %vm866, %v847, %v865
        %vm868 = vcmask 1045509
        %v869 = vsel %vm868, %v851, %v867
        %vm870 = vcmask 1046534
        %v871 = vsel %vm870, %v855, %v869
        %vm872 = vcmask 1047559
        %v873 = vsel %vm872, %v859, %v871
        %v875 = vsel %vm793, %v873, 0.0
        %876 = vadd.xlane.f32.xlu0 %v875
        %v877 = vpop.xlane.xlu0 %876
        %v878 = vmul.f32 %v877, 0.015625
        %v879 = vsel %vm793, %v785, -inf
        %880 = vmax.xlane.f32.xlu0 %v879
        %v881 = vpop.xlane.xlu0 %880
        %v882 = vsel %vm793, %v786, -inf
        %883 = vmax.xlane.f32.xlu0 %v882
        %v884 = vpop.xlane.xlu0 %883
        %v885 = vsel %vm793, %v787, -inf
        %886 = vmax.xlane.f32.xlu0 %v885
        %v887 = vpop.xlane.xlu0 %886
        %v888 = vsel %vm793, %v788, -inf
        %889 = vmax.xlane.f32.xlu0 %v888
        %v890 = vpop.xlane.xlu0 %889
        %v891 = vsel %vm793, %v789, -inf
        %892 = vmax.xlane.f32.xlu0 %v891
        %v893 = vpop.xlane.xlu0 %892
        %v894 = vsel %vm793, %v790, -inf
        %895 = vmax.xlane.f32.xlu0 %v894
        %v896 = vpop.xlane.xlu0 %895
        %v897 = vsel %vm793, %v791, -inf
        %898 = vmax.xlane.f32.xlu0 %v897
        %v899 = vpop.xlane.xlu0 %898
        %v900 = vsel %vm793, %v792, -inf
        %901 = vmax.xlane.f32.xlu0 %v900
        %v902 = vpop.xlane.xlu0 %901
        %v911 = vlaneseq
        %v912 = vshrl.u32 %v911, 7
        %v913 = vsub.s32 %v827, %v912
        %v914 = vrot.slane %v881, %v913
        %v915 = vlaneseq
        %v916 = vshrl.u32 %v915, 7
        %v917 = vsub.s32 %v827, %v916
        %v918 = vrot.slane %v884, %v917
        %v919 = vlaneseq
        %v920 = vshrl.u32 %v919, 7
        %v921 = vsub.s32 %v827, %v920
        %v922 = vrot.slane %v887, %v921
        %v923 = vlaneseq
        %v924 = vshrl.u32 %v923, 7
        %v925 = vsub.s32 %v827, %v924
        %v926 = vrot.slane %v890, %v925
        %v927 = vlaneseq
        %v928 = vshrl.u32 %v927, 7
        %v929 = vsub.s32 %v827, %v928
        %v930 = vrot.slane %v893, %v929
        %v931 = vlaneseq
        %v932 = vshrl.u32 %v931, 7
        %v933 = vsub.s32 %v827, %v932
        %v934 = vrot.slane %v896, %v933
        %v935 = vlaneseq
        %v936 = vshrl.u32 %v935, 7
        %v937 = vsub.s32 %v827, %v936
        %v938 = vrot.slane %v899, %v937
        %v939 = vlaneseq
        %v940 = vshrl.u32 %v939, 7
        %v941 = vsub.s32 %v827, %v940
        %v942 = vrot.slane %v902, %v941
        %v943 = vsel %vm860, %v918, %v914
        %v944 = vsel %vm862, %v922, %v943
        %v945 = vsel %vm864, %v926, %v944
        %v946 = vsel %vm866, %v930, %v945
        %v947 = vsel %vm868, %v934, %v946
        %v948 = vsel %vm870, %v938, %v947
        %v949 = vsel %vm872, %v942, %v948
        %v951 = vsel %vm793, %v949, -inf
        %952 = vmax.xlane.f32.xlu0 %v951
        %v953 = vpop.xlane.xlu0 %952
        %v955 = vlaneseq
        %v956 = vshrl.u32 %v955, 7
        %v957 = vsub.s32 %v827, %v956
        %v958 = vrot.slane %v878, %v957
        %v961 = vadd.s32 %v827, 4294967288
        %v962 = vlaneseq
        %v963 = vshrl.u32 %v962, 7
        %v964 = vsub.s32 %v961, %v963
        %v965 = vrot.slane %v953, %v964
        %v967 = vsel %vm793, %v958, %v965
        %vm968 = vcmask 122880
        %969 = vst.msk [vmem:[%s231] sm:$0x1] %vm968, %v967
        %s970 = sand.u32 %s142, 1
        %s971 = scalar_lea.sflag [#allocation3], %s970
        %s972 = sand.u32 %s142, 1
        %s973 = scalar_lea.vmem [#allocation2], %s972
        // Predicated region
        $region41: #{tpu_custom_call.1} parent=39 // pred_check
          %p974 = pneg %p152
        $region42: #{tpu_custom_call.1} parent=39 // pred_check_branch
          %976 = sbr.rel (%p974) target = $region44
        $region43: #{tpu_custom_call.1} parent=39 // pred_region
          %s978 = ssub.s32 16, 16
          %979 = vsyncadd %s971, %s978
          %s980 = smul.addr %s19, 16
          %s981 = scalar_lea.hbm %s5, %s980
          %s983 = sshll.u32 %s973, 4
          %s984 = int_to_ptr.vmem [resolvable:$true] %s983
          %986 = dma.vmem_to_hbm [thread:$0]  %s984, 16, %s981, %s971
        $region44: #{tpu_custom_call.1} parent=39 // pred_fallthru
          _
      $region40: #{tpu_custom_call.1} parent=5 // pred_fallthru
        _
      %p987 = scmp.le.s32.totalorder 2, %s14
      // Predicated region
      $region45: #{tpu_custom_call.1} parent=5 // pred_check
        %p988 = pneg %p987
      $region46: #{tpu_custom_call.1} parent=5 // pred_check_branch
        %990 = sbr.rel (%p988) target = $region48
      $region47: #{tpu_custom_call.1} parent=5 // pred_region
        %s991 = ssub.s32 %s14, 2
        // Predicated region
        $region49: #{tpu_custom_call.1} parent=47 // pred_check
          %p992 = pneg %p158
        $region50: #{tpu_custom_call.1} parent=47 // pred_check_branch
          %994 = sbr.rel (%p992) target = $region52
        $region51: #{tpu_custom_call.1} parent=47 // pred_region
          %s995 = sand.u32 %s143, 1
          %s996 = scalar_lea.sflag [#allocation3], %s995
          %s997 = sand.u32 %s143, 1
          %s998 = scalar_lea.vmem [#allocation2], %s997
          %999 = dma.done %s996, 16
        $region52: #{tpu_custom_call.1} parent=47 // pred_fallthru
          _
      $region48: #{tpu_custom_call.1} parent=5 // pred_fallthru
        _
    $region6: #{tpu_custom_call.1} parent=1 // loop_footer
      %s18 = sadd.s32 1, %s14
    $region7: #{tpu_custom_call.1} parent=1 // loop_footer_branch
      %13 = sbr.rel target = $region3
    $region8: #{tpu_custom_call.1} parent=1 // loop_exit
      _
    %1000 = vsyncpa [#allocation3], 1
    %s1001 = scalar_lea.sflag [#allocation3], 1
    %1002 = vsyncpa %s1001, 1

</llo_original>
